<compile_context>
chip_gen: v6e
topology: v6e:2x2x1
jax: 0.10.0
libtpu: 0.0.40
codegen_flags: <defaults>
</compile_context>

<pallas_src>
import functools
import math

import jax
import jax.numpy as jnp
import numpy as np
from jax.experimental import pallas as pl
from jax.experimental.pallas import tpu as pltpu

LOG_2PI = float(math.log(2.0 * math.pi))


def _gmvae_kernel(*refs, sample: bool):
    if sample:
        (mu_ref, logvar_ref, eps_ref, w_ref, bias_ref, z_ref, ll_ref) = refs
        # sampling_gaussian: z = mu + sigma * eps, sigma = exp(0.5*logvar)
        z = (mu_ref[...].astype(jnp.float32)
             + jnp.exp(0.5 * logvar_ref[...].astype(jnp.float32))
             * eps_ref[...].astype(jnp.float32))
    else:
        (mu_ref, w_ref, bias_ref, z_ref, ll_ref) = refs
        # is_featExtract: _infer_latent returns z = mu (no noise)
        z = mu_ref[...].astype(jnp.float32)

    z_ref[...] = z.astype(z_ref.dtype)

    # approx_qy_x (expanded quadratic form, component constants hoisted):
    #   loglogit_k = -0.5 * (z^2 . inv_var_k) + z . (mu_k * inv_var_k) + bias_k
    # with bias_k folding sum(mu_k^2*inv_var_k), sum(logvar_k), D*log(2*pi), log(1/K).
    # Both contractions are fused into a single MXU matmul against (2D, K_pad).
    feat = jnp.concatenate([z * z, z], axis=-1)                       # (tile_b, 2D)
    ll_ref[...] = (jnp.dot(feat, w_ref[...], preferred_element_type=jnp.float32)
                   + bias_ref[...])


def _round_down8(x):
    return max(8, (int(x) // 8) * 8)


def _vmem_step_bytes(tile_b, D, K_pad, n_row_inputs, in_item, z_item):
    # double-buffered per-step footprint: row inputs + z + ll tiles + resident consts
    rows = tile_b * (n_row_inputs * D * in_item + D * z_item + K_pad * 4)
    consts = (2 * D * K_pad + K_pad) * 4
    return 2 * (rows + consts)


@functools.partial(jax.jit, static_argnames=("is_featExtract", "tile_b"))
def gmvae_forward(mu, logvar, eps, mu_lookup, logvar_lookup,
                  is_featExtract=False, tile_b=512):
    """Pallas implementation of BaseGMVAE._infer_latent + BaseGMVAE._infer_class."""
    B, D = mu.shape
    K = mu_lookup.shape[0]
    f32 = jnp.float32
    in_dtype = mu.dtype
    in_item = jnp.dtype(in_dtype).itemsize

    # ---- hoisted, batch-independent component constants (computed once, fused by jit) ----
    mu_k = mu_lookup.astype(f32)
    lv_k = logvar_lookup.astype(f32)
    inv_var = jnp.exp(-lv_k)                                          # (K, D)
    w_inv = jnp.transpose(-0.5 * inv_var)                             # (D, K)
    w_mu = jnp.transpose(mu_k * inv_var)                              # (D, K)
    bias = (-0.5 * (jnp.sum(mu_k * mu_k * inv_var, axis=1)
                    + jnp.sum(lv_k, axis=1)
                    + D * LOG_2PI)
            + math.log(1.0 / K))                                      # (K,)

    # ---- pad K to a multiple of 128 for a lane-dense MXU result / store ----
    K_pad = ((K + 127) // 128) * 128
    w = jnp.concatenate([w_inv, w_mu], axis=0)                        # (2D, K)
    w = jnp.pad(w, ((0, 0), (0, K_pad - K)))                          # (2D, K_pad)
    bias = jnp.pad(bias, (0, K_pad - K), constant_values=-1e30)[None, :]  # (1, K_pad)

    # ---- batch tiling ----
    B_pad8 = ((B + 7) // 8) * 8
    tb = _round_down8(min(int(tile_b), B_pad8))
    if tb == B_pad8 and B_pad8 >= 16:
        # split a single full-batch tile in two so the "parallel" axis can use
        # both TensorCores on v7x (single TC chips only pay one extra grid step)
        tb = _round_down8(B_pad8 // 2)
    n_row_in = 1 if is_featExtract else 3
    vmem_budget = 36 * 2**20
    while tb > 8 and _vmem_step_bytes(tb, D, K_pad, n_row_in, in_item, in_item) > vmem_budget:
        tb = _round_down8(tb // 2)

    n_tiles = -(-B // tb)
    B_pad = n_tiles * tb

    def pad_b(x):
        # NOTE: no dtype cast here -- inputs stay in their native dtype
        return x if x.shape[0] == B_pad else jnp.pad(x, ((0, B_pad - B), (0, 0)))

    row_spec = pl.BlockSpec((tb, D), lambda i: (i, 0))
    w_spec = pl.BlockSpec((2 * D, K_pad), lambda i: (0, 0))           # resident across steps
    b_spec = pl.BlockSpec((1, K_pad), lambda i: (0, 0))

    if is_featExtract:
        inputs = (pad_b(mu), w, bias)
        in_specs = [row_spec, w_spec, b_spec]
    else:
        inputs = (pad_b(mu), pad_b(logvar), pad_b(eps), w, bias)
        in_specs = [row_spec, row_spec, row_spec, w_spec, b_spec]

    step_bytes = _vmem_step_bytes(tb, D, K_pad, n_row_in, in_item, in_item)
    vmem_limit = int(min(48 * 2**20, max(32 * 2**20, step_bytes + (4 << 20))))

    z_p, ll_p = pl.pallas_call(
        functools.partial(_gmvae_kernel, sample=not is_featExtract),
        grid=(n_tiles,),
        in_specs=in_specs,
        out_specs=(
            pl.BlockSpec((tb, D), lambda i: (i, 0)),
            pl.BlockSpec((tb, K_pad), lambda i: (i, 0)),
        ),
        out_shape=(
            jax.ShapeDtypeStruct((B_pad, D), in_dtype),
            jax.ShapeDtypeStruct((B_pad, K_pad), f32),
        ),
        compiler_params=pltpu.CompilerParams(
            dimension_semantics=("parallel",),
            vmem_limit_bytes=vmem_limit,
        ),
    )(*inputs)

    # Fused (under jit) post-processing: slice away pads, softmax over the true K
    # components, and torch.max(qy_x, dim=1) index (== argmax of logLogit).
    z = z_p[:B]
    loglogit = ll_p[:B, :K]
    qy_x = jax.nn.softmax(loglogit, axis=1)
    y = jnp.argmax(loglogit, axis=1).astype(jnp.int32)
    return mu, logvar, z, loglogit, qy_x, y


def _reference(mu, logvar, eps, mu_lookup, logvar_lookup):
    """Pure-JAX reference matching the PyTorch semantics."""
    z = mu + jnp.sqrt(jnp.exp(logvar)) * eps
    K = mu_lookup.shape[0]
    diff = z[:, None, :] - mu_lookup[None, :, :]
    llh = -0.5 * (diff ** 2 / jnp.exp(logvar_lookup)[None]
                  + logvar_lookup[None] + LOG_2PI)
    loglogit = jnp.sum(llh, axis=2) + math.log(1.0 / K)
    qy = jax.nn.softmax(loglogit, axis=1)
    y = jnp.argmax(qy, axis=1)
    return z, loglogit, qy, y


if __name__ == "__main__":
    B, D, K = 16, 32, 10   # batch, latent_dim, n_component

    key = jax.random.PRNGKey(0)
    k_mu, k_lv, k_eps, k_lk = jax.random.split(key, 4)

    # encoder outputs (stand-ins, since encode() is abstract)
    mu = jax.random.normal(k_mu, (B, D), dtype=jnp.float32)
    logvar = 0.1 * jax.random.normal(k_lv, (B, D), dtype=jnp.float32)
    eps = jax.random.normal(k_eps, (B, D), dtype=jnp.float32)

    # _build_mu_lookup: Xavier-uniform init on (K, D) embedding weight
    xavier_bound = math.sqrt(6.0 / (K + D))
    mu_lookup = jax.random.uniform(k_lk, (K, D), dtype=jnp.float32,
                                   minval=-xavier_bound, maxval=xavier_bound)
    # _build_logvar_lookup with pow_exp=0 -> constant log(exp(0)^2) = 0
    logvar_lookup = jnp.zeros((K, D), dtype=jnp.float32)

    # sampling path (default tile_b; tiny B clamps/splits to 2 grid steps)
    out = gmvae_forward(mu, logvar, eps, mu_lookup, logvar_lookup)
    out = jax.block_until_ready(out)
    _, _, z, loglogit, qy_x, y = out

    z_r, ll_r, qy_r, y_r = _reference(mu, logvar, eps, mu_lookup, logvar_lookup)
    np.testing.assert_allclose(np.asarray(z), np.asarray(z_r), rtol=1e-5, atol=1e-5)
    np.testing.assert_allclose(np.asarray(loglogit), np.asarray(ll_r), rtol=1e-4, atol=1e-4)
    np.testing.assert_allclose(np.asarray(qy_x), np.asarray(qy_r), rtol=1e-4, atol=1e-5)
    np.testing.assert_array_equal(np.asarray(y), np.asarray(y_r))

    # feature-extraction path (z = mu, no eps/logvar DMA)
    out_fe = jax.block_until_ready(
        gmvae_forward(mu, logvar, eps, mu_lookup, logvar_lookup, is_featExtract=True))
    _, _, z_fe, ll_fe, qy_fe, y_fe = out_fe
    z_fr, ll_fr, qy_fr, y_fr = _reference(mu, logvar, jnp.zeros_like(eps),
                                          mu_lookup, logvar_lookup)
    np.testing.assert_allclose(np.asarray(z_fe), np.asarray(z_fr), rtol=1e-5, atol=1e-5)
    np.testing.assert_allclose(np.asarray(ll_fe), np.asarray(ll_fr), rtol=1e-4, atol=1e-4)
    np.testing.assert_allclose(np.asarray(qy_fe), np.asarray(qy_fr), rtol=1e-4, atol=1e-5)
    np.testing.assert_array_equal(np.asarray(y_fe), np.asarray(y_fr))

    print("KERNEL_OK")
</pallas_src>

<mosaic_0001>
module attributes {stable_mosaic.version = 11 : i64} {
  func.func @_gmvae_kernel(%arg0: i32, %arg1: memref<8x32xf32, #tpu.memory_space<vmem>>, %arg2: memref<8x32xf32, #tpu.memory_space<vmem>>, %arg3: memref<8x32xf32, #tpu.memory_space<vmem>>, %arg4: memref<64x128xf32, #tpu.memory_space<vmem>>, %arg5: memref<1x128xf32, #tpu.memory_space<vmem>>, %arg6: memref<8x32xf32, #tpu.memory_space<vmem>>, %arg7: memref<8x128xf32, #tpu.memory_space<vmem>>) attributes {dimension_semantics = [#tpu.dimension_semantics<parallel>], iteration_bounds = array<i64: 2>, scalar_prefetch = 0 : i64, scratch_operands = 0 : i64, tpu.core_type = #tpu.core_type<tc>, window_params = [{transform_indices = @transform_0, window_bounds = array<i64: 8, 32>}, {transform_indices = @transform_1, window_bounds = array<i64: 8, 32>}, {transform_indices = @transform_2, window_bounds = array<i64: 8, 32>}, {pipeline_mode = #tpu.pipeline_mode<synchronous>, transform_indices = @transform_3, window_bounds = array<i64: 64, 128>}, {pipeline_mode = #tpu.pipeline_mode<synchronous>, transform_indices = @transform_4, window_bounds = array<i64: 1, 128>}, {transform_indices = @transform_5, window_bounds = array<i64: 8, 32>}, {transform_indices = @transform_6, window_bounds = array<i64: 8, 128>}]} {
    %c0 = arith.constant 0 : index
    %c0_0 = arith.constant 0 : index
    %0 = vector.load %arg1[%c0, %c0_0] : memref<8x32xf32, #tpu.memory_space<vmem>>, vector<8x32xf32>
    %c0_1 = arith.constant 0 : index
    %c0_2 = arith.constant 0 : index
    %1 = vector.load %arg2[%c0_1, %c0_2] : memref<8x32xf32, #tpu.memory_space<vmem>>, vector<8x32xf32>
    %cst = arith.constant 5.000000e-01 : f32
    %2 = vector.broadcast %cst : f32 to vector<8x32xf32>
    %3 = arith.mulf %2, %1 : vector<8x32xf32>
    %4 = math.exp %3 : vector<8x32xf32>
    %c0_3 = arith.constant 0 : index
    %c0_4 = arith.constant 0 : index
    %5 = vector.load %arg3[%c0_3, %c0_4] : memref<8x32xf32, #tpu.memory_space<vmem>>, vector<8x32xf32>
    %6 = arith.mulf %4, %5 : vector<8x32xf32>
    %7 = arith.addf %0, %6 : vector<8x32xf32>
    %c0_5 = arith.constant 0 : index
    %c0_6 = arith.constant 0 : index
    %8 = vector.load %arg6[%c0_5, %c0_6] : memref<8x32xf32, #tpu.memory_space<vmem>>, vector<8x32xf32>
    tpu.vector_store %arg6[%c0_5, %c0_6], %7 {strides = array<i32>} : memref<8x32xf32, #tpu.memory_space<vmem>>, vector<8x32xf32>,
    %9 = arith.mulf %7, %7 : vector<8x32xf32>
    %10 = tpu.concatenate %9, %7 in 1 : vector<8x32xf32>, vector<8x32xf32> -> vector<8x64xf32>
    %c0_7 = arith.constant 0 : index
    %c0_8 = arith.constant 0 : index
    %11 = vector.load %arg4[%c0_7, %c0_8] : memref<64x128xf32, #tpu.memory_space<vmem>>, vector<64x128xf32>
    %cst_9 = arith.constant dense<0.000000e+00> : vector<8x128xf32>
    %12 = tpu.matmul %10, %11, %cst_9 {dimension_numbers = #tpu.dot_dimension_numbers<[1], [0], [0], [1], [0, 0, 1, 1], [], []>} : vector<8x64xf32>, vector<64x128xf32>, vector<8x128xf32> -> vector<8x128xf32>
    %c0_10 = arith.constant 0 : index
    %c0_11 = arith.constant 0 : index
    %13 = vector.load %arg5[%c0_10, %c0_11] : memref<1x128xf32, #tpu.memory_space<vmem>>, vector<1x128xf32>
    %14 = vector.broadcast %13 : vector<1x128xf32> to vector<8x128xf32>
    %15 = arith.addf %12, %14 : vector<8x128xf32>
    %c0_12 = arith.constant 0 : index
    %c0_13 = arith.constant 0 : index
    %16 = vector.load %arg7[%c0_12, %c0_13] : memref<8x128xf32, #tpu.memory_space<vmem>>, vector<8x128xf32>
    tpu.vector_store %arg7[%c0_12, %c0_13], %15 {strides = array<i32>} : memref<8x128xf32, #tpu.memory_space<vmem>>, vector<8x128xf32>,
    return
  }
  func.func @transform_0(%arg0: i32) -> (i32, i32) {
    %c0_i32 = arith.constant 0 : i32
    %c0_i32_0 = arith.constant 0 : i32
    return %arg0, %c0_i32 : i32, i32
  }
  func.func @transform_1(%arg0: i32) -> (i32, i32) {
    %c0_i32 = arith.constant 0 : i32
    %c0_i32_0 = arith.constant 0 : i32
    return %arg0, %c0_i32 : i32, i32
  }
  func.func @transform_2(%arg0: i32) -> (i32, i32) {
    %c0_i32 = arith.constant 0 : i32
    %c0_i32_0 = arith.constant 0 : i32
    return %arg0, %c0_i32 : i32, i32
  }
  func.func @transform_3(%arg0: i32) -> (i32, i32) {
    %c0_i32 = arith.constant 0 : i32
    %c0_i32_0 = arith.constant 0 : i32
    %c0_i32_1 = arith.constant 0 : i32
    return %c0_i32, %c0_i32_0 : i32, i32
  }
  func.func @transform_4(%arg0: i32) -> (i32, i32) {
    %c0_i32 = arith.constant 0 : i32
    %c0_i32_0 = arith.constant 0 : i32
    %c0_i32_1 = arith.constant 0 : i32
    return %c0_i32, %c0_i32_0 : i32, i32
  }
  func.func @transform_5(%arg0: i32) -> (i32, i32) {
    %c0_i32 = arith.constant 0 : i32
    %c0_i32_0 = arith.constant 0 : i32
    return %arg0, %c0_i32 : i32, i32
  }
  func.func @transform_6(%arg0: i32) -> (i32, i32) {
    %c0_i32 = arith.constant 0 : i32
    %c0_i32_0 = arith.constant 0 : i32
    return %arg0, %c0_i32 : i32, i32
  }
}

</mosaic_0001>

<llo_original>
// kernel: gmvae_forward.1
$region0: #{gmvae_forward.1}
  #allocation0 [shape = 'u32[]', space=smem, size = 0x4, offset = 0x4, fixed_abs, tag = 'smem constant byte address 0x4 - core index']
  #allocation1 [shape = 'u32[144,128]{1,0:T(1,128)}', space=vmem, size = 0x12000, scoped, tag = 'internal scratch']
  %s0 = inlined_call_operand.vmem [shape: f32[16,32], index: 0, kind: input, shape index: {}]
  %s1 = inlined_call_operand.vmem [shape: f32[16,32], index: 1, kind: input, shape index: {}]
  %s2 = inlined_call_operand.vmem [shape: f32[16,32], index: 2, kind: input, shape index: {}]
  %s3 = inlined_call_operand.vmem [shape: f32[64,128], index: 3, kind: input, shape index: {}]
  %s4 = inlined_call_operand.vmem [shape: f32[1,128], index: 4, kind: input, shape index: {}]
  %s5 = inlined_call_operand.hbm [shape: f32[16,32], index: 5, kind: output, shape index: {0}]
  %s6 = inlined_call_operand.vmem [shape: f32[16,128], index: 6, kind: output, shape index: {1}]
  %7 = xla_tuple %s5, %s6
  %s8 = sld [smem:[#allocation0]]
  $region61: #{gmvae_forward.1} parent=0
    _
  %s10 = ssub.s32 1, %s8
  %s11 = scalar_select 0, %s10, %s8
  $region1: #{gmvae_forward.1} parent=0
    #allocation2 [shape = 'u8[8192]{0}', space=vmem, size = 0x2000, scoped, tag = 'output window, operand 0']
    #allocation3 [shape = 's32[2]{0}', space=sflag, size = 0x8, scoped, tag = 'scoped memory for gmvae_forward.1']
    %12 = vsyncpa [#allocation3], 0
    %s13 = scalar_lea.sflag [#allocation3], 1
    %14 = vsyncpa %s13, 0
    loop: start=0, step=1, limit=4
    $region2: #{gmvae_forward.1} parent=1 // loop_pre_header
      _
    $region3: #{gmvae_forward.1} parent=1 // loop_header
      %s16 = sphi 0, %s20
      %p17 = scmp.ge.s32.totalorder %s16, 4
      %s26 = sphi 0, %s28
      %s29 = sphi 0, %s26
      %s30 = sphi 0, %s29
      %s46 = sphi 0, %s30
      %s52 = sphi 0, %s54
      %s55 = sphi 0, %s52
      %s56 = sphi 0, %s55
      %s72 = sphi 0, %s56
      %s78 = sphi 0, %s80
      %s81 = sphi 0, %s78
      %s82 = sphi 0, %s81
      %s98 = sphi 0, %s82
      %s102 = sphi 0, %s102
      %s104 = sphi 0, %s102
      %s105 = sphi 0, %s104
      %s119 = sphi 0, %s105
      %s123 = sphi 0, %s123
      %s125 = sphi 0, %s123
      %s126 = sphi 0, %s125
      %s140 = sphi 0, %s126
      %s146 = sphi 0, %s148
      %s149 = sphi 0, %s146
      %s150 = sphi 0, %s149
      %s166 = sphi 0, %s150
      %s172 = sphi 0, %s174
      %s175 = sphi 0, %s172
      %s176 = sphi 0, %s175
      %s192 = sphi 0, %s176
    $region4: #{gmvae_forward.1} parent=1 // loop_header_branch
      %19 = sbr.rel (%p17) target = $region8
    $region5: #{gmvae_forward.1} parent=1 // loop_body
      %s21 = ssub.s32 %s16, 1
      %s22 = ssub.s32 %s16, 2
      %s23 = sadd.s32 %s16, 1
      %s24 = ssub.s32 %s16, %s23
      %p25 = scmp.eq.s32.totalorder %s24, 0
      %s27 = sadd.s32 %s26, 1
      %s28 = scalar_select %p25, %s26, %s27
      %p31 = pneg %p25
      %p32 = scmp.eq.s32.totalorder %s16, 1
      %p33 = por %p31, %p32
      %p34 = scmp.ne.s32.totalorder %s26, %s29
      %p35 = scmp.eq.s32.totalorder %s16, 0
      %p36 = por %p34, %p35
      %p37 = scmp.ne.s32.totalorder %s26, %s29
      %p38 = scmp.eq.s32.totalorder %s21, 1
      %p39 = por %p37, %p38
      %p40 = scmp.ne.s32.totalorder %s29, %s30
      %p41 = scmp.eq.s32.totalorder %s21, 0
      %p42 = por %p40, %p41
      %p43 = scmp.ne.s32.totalorder %s29, %s30
      %p44 = scmp.eq.s32.totalorder %s22, 1
      %p45 = por %p43, %p44
      %p47 = scmp.ne.s32.totalorder %s30, %s46
      %p48 = scmp.eq.s32.totalorder %s22, 0
      %p49 = por %p47, %p48
      %s50 = ssub.s32 %s16, %s23
      %p51 = scmp.eq.s32.totalorder %s50, 0
      %s53 = sadd.s32 %s52, 1
      %s54 = scalar_select %p51, %s52, %s53
      %p57 = pneg %p51
      %p58 = scmp.eq.s32.totalorder %s16, 1
      %p59 = por %p57, %p58
      %p60 = scmp.ne.s32.totalorder %s52, %s55
      %p61 = scmp.eq.s32.totalorder %s16, 0
      %p62 = por %p60, %p61
      %p63 = scmp.ne.s32.totalorder %s52, %s55
      %p64 = scmp.eq.s32.totalorder %s21, 1
      %p65 = por %p63, %p64
      %p66 = scmp.ne.s32.totalorder %s55, %s56
      %p67 = scmp.eq.s32.totalorder %s21, 0
      %p68 = por %p66, %p67
      %p69 = scmp.ne.s32.totalorder %s55, %s56
      %p70 = scmp.eq.s32.totalorder %s22, 1
      %p71 = por %p69, %p70
      %p73 = scmp.ne.s32.totalorder %s56, %s72
      %p74 = scmp.eq.s32.totalorder %s22, 0
      %p75 = por %p73, %p74
      %s76 = ssub.s32 %s16, %s23
      %p77 = scmp.eq.s32.totalorder %s76, 0
      %s79 = sadd.s32 %s78, 1
      %s80 = scalar_select %p77, %s78, %s79
      %p83 = pneg %p77
      %p84 = scmp.eq.s32.totalorder %s16, 1
      %p85 = por %p83, %p84
      %p86 = scmp.ne.s32.totalorder %s78, %s81
      %p87 = scmp.eq.s32.totalorder %s16, 0
      %p88 = por %p86, %p87
      %p89 = scmp.ne.s32.totalorder %s78, %s81
      %p90 = scmp.eq.s32.totalorder %s21, 1
      %p91 = por %p89, %p90
      %p92 = scmp.ne.s32.totalorder %s81, %s82
      %p93 = scmp.eq.s32.totalorder %s21, 0
      %p94 = por %p92, %p93
      %p95 = scmp.ne.s32.totalorder %s81, %s82
      %p96 = scmp.eq.s32.totalorder %s22, 1
      %p97 = por %p95, %p96
      %p99 = scmp.ne.s32.totalorder %s82, %s98
      %p100 = scmp.eq.s32.totalorder %s22, 0
      %p101 = por %p99, %p100
      %s103 = sadd.s32 %s102, 1
      %p106 = scmp.eq.s32.totalorder %s16, 1
      %p107 = scmp.ne.s32.totalorder %s102, %s104
      %p108 = scmp.eq.s32.totalorder %s16, 0
      %p109 = por %p107, %p108
      %p110 = scmp.ne.s32.totalorder %s102, %s104
      %p111 = scmp.eq.s32.totalorder %s21, 1
      %p112 = por %p110, %p111
      %p113 = scmp.ne.s32.totalorder %s104, %s105
      %p114 = scmp.eq.s32.totalorder %s21, 0
      %p115 = por %p113, %p114
      %p116 = scmp.ne.s32.totalorder %s104, %s105
      %p117 = scmp.eq.s32.totalorder %s22, 1
      %p118 = por %p116, %p117
      %p120 = scmp.ne.s32.totalorder %s105, %s119
      %p121 = scmp.eq.s32.totalorder %s22, 0
      %p122 = por %p120, %p121
      %s124 = sadd.s32 %s123, 1
      %p127 = scmp.eq.s32.totalorder %s16, 1
      %p128 = scmp.ne.s32.totalorder %s123, %s125
      %p129 = scmp.eq.s32.totalorder %s16, 0
      %p130 = por %p128, %p129
      %p131 = scmp.ne.s32.totalorder %s123, %s125
      %p132 = scmp.eq.s32.totalorder %s21, 1
      %p133 = por %p131, %p132
      %p134 = scmp.ne.s32.totalorder %s125, %s126
      %p135 = scmp.eq.s32.totalorder %s21, 0
      %p136 = por %p134, %p135
      %p137 = scmp.ne.s32.totalorder %s125, %s126
      %p138 = scmp.eq.s32.totalorder %s22, 1
      %p139 = por %p137, %p138
      %p141 = scmp.ne.s32.totalorder %s126, %s140
      %p142 = scmp.eq.s32.totalorder %s22, 0
      %p143 = por %p141, %p142
      %s144 = ssub.s32 %s16, %s23
      %p145 = scmp.eq.s32.totalorder %s144, 0
      %s147 = sadd.s32 %s146, 1
      %s148 = scalar_select %p145, %s146, %s147
      %p151 = pneg %p145
      %p152 = scmp.eq.s32.totalorder %s16, 1
      %p153 = por %p151, %p152
      %p154 = scmp.ne.s32.totalorder %s146, %s149
      %p155 = scmp.eq.s32.totalorder %s16, 0
      %p156 = por %p154, %p155
      %p157 = scmp.ne.s32.totalorder %s146, %s149
      %p158 = scmp.eq.s32.totalorder %s21, 1
      %p159 = por %p157, %p158
      %p160 = scmp.ne.s32.totalorder %s149, %s150
      %p161 = scmp.eq.s32.totalorder %s21, 0
      %p162 = por %p160, %p161
      %p163 = scmp.ne.s32.totalorder %s149, %s150
      %p164 = scmp.eq.s32.totalorder %s22, 1
      %p165 = por %p163, %p164
      %p167 = scmp.ne.s32.totalorder %s150, %s166
      %p168 = scmp.eq.s32.totalorder %s22, 0
      %p169 = por %p167, %p168
      %s170 = ssub.s32 %s16, %s23
      %p171 = scmp.eq.s32.totalorder %s170, 0
      %s173 = sadd.s32 %s172, 1
      %s174 = scalar_select %p171, %s172, %s173
      %p177 = pneg %p171
      %p178 = scmp.eq.s32.totalorder %s16, 1
      %p179 = por %p177, %p178
      %p180 = scmp.ne.s32.totalorder %s172, %s175
      %p181 = scmp.eq.s32.totalorder %s16, 0
      %p182 = por %p180, %p181
      %p183 = scmp.ne.s32.totalorder %s172, %s175
      %p184 = scmp.eq.s32.totalorder %s21, 1
      %p185 = por %p183, %p184
      %p186 = scmp.ne.s32.totalorder %s175, %s176
      %p187 = scmp.eq.s32.totalorder %s21, 0
      %p188 = por %p186, %p187
      %p189 = scmp.ne.s32.totalorder %s175, %s176
      %p190 = scmp.eq.s32.totalorder %s22, 1
      %p191 = por %p189, %p190
      %p193 = scmp.ne.s32.totalorder %s176, %s192
      %p194 = scmp.eq.s32.totalorder %s22, 0
      %p195 = por %p193, %p194
      %p196 = scmp.le.s32.totalorder 1, %s16
      %p197 = scmp.lt.s32.totalorder %s16, 3
      %p198 = pnand %p196, %p197
      %p199 = pneg %p198
      // Predicated region
      $region9: #{gmvae_forward.1} parent=5 // pred_check
        _
      $region10: #{gmvae_forward.1} parent=5 // pred_check_branch
        %201 = sbr.rel (%p198) target = $region12
      $region11: #{gmvae_forward.1} parent=5 // pred_region
        %s202 = ssub.s32 %s16, 1
        // Predicated region
        $region13: #{gmvae_forward.1} parent=11 // pred_check
          %p203 = pneg %p115
        $region14: #{gmvae_forward.1} parent=11 // pred_check_branch
          %205 = sbr.rel (%p203) target = $region16
        $region15: #{gmvae_forward.1} parent=11 // pred_region
          _
        $region16: #{gmvae_forward.1} parent=11 // pred_fallthru
          _
        // Predicated region
        $region17: #{gmvae_forward.1} parent=11 // pred_check
          %p206 = pneg %p136
        $region18: #{gmvae_forward.1} parent=11 // pred_check_branch
          %208 = sbr.rel (%p206) target = $region20
        $region19: #{gmvae_forward.1} parent=11 // pred_region
          _
        $region20: #{gmvae_forward.1} parent=11 // pred_fallthru
          _
      $region12: #{gmvae_forward.1} parent=5 // pred_fallthru
        _
      %p209 = scmp.lt.s32.totalorder %s16, 2
      // Predicated region
      $region21: #{gmvae_forward.1} parent=5 // pred_check
        %p210 = pneg %p209
      $region22: #{gmvae_forward.1} parent=5 // pred_check_branch
        %212 = sbr.rel (%p210) target = $region24
      $region23: #{gmvae_forward.1} parent=5 // pred_region
        // Predicated region
        $region25: #{gmvae_forward.1} parent=23 // pred_check
          %p213 = pneg %p36
        $region26: #{gmvae_forward.1} parent=23 // pred_check_branch
          %215 = sbr.rel (%p213) target = $region28
        $region27: #{gmvae_forward.1} parent=23 // pred_region
          %p216 = scmp.lt.s32.totalorder %s16, 1
          %s217 = scalar_select %p216, %s16, 1
          %s218 = smul.addr %s217, 8
          %s219 = scalar_lea.vmem %s0, %s218
        $region28: #{gmvae_forward.1} parent=23 // pred_fallthru
          _
        // Predicated region
        $region29: #{gmvae_forward.1} parent=23 // pred_check
          %p220 = pneg %p62
        $region30: #{gmvae_forward.1} parent=23 // pred_check_branch
          %222 = sbr.rel (%p220) target = $region32
        $region31: #{gmvae_forward.1} parent=23 // pred_region
          %p223 = scmp.lt.s32.totalorder %s16, 1
          %s224 = scalar_select %p223, %s16, 1
          %s225 = smul.addr %s224, 8
          %s226 = scalar_lea.vmem %s1, %s225
        $region32: #{gmvae_forward.1} parent=23 // pred_fallthru
          _
        // Predicated region
        $region33: #{gmvae_forward.1} parent=23 // pred_check
          %p227 = pneg %p88
        $region34: #{gmvae_forward.1} parent=23 // pred_check_branch
          %229 = sbr.rel (%p227) target = $region36
        $region35: #{gmvae_forward.1} parent=23 // pred_region
          %p230 = scmp.lt.s32.totalorder %s16, 1
          %s231 = scalar_select %p230, %s16, 1
          %s232 = smul.addr %s231, 8
          %s233 = scalar_lea.vmem %s2, %s232
        $region36: #{gmvae_forward.1} parent=23 // pred_fallthru
          _
      $region24: #{gmvae_forward.1} parent=5 // pred_fallthru
        _
      %p234 = scmp.le.s32.totalorder 1, %s16
      %p235 = scmp.lt.s32.totalorder %s16, 3
      %p236 = pnand %p234, %p235
      %p237 = pneg %p236
      // Predicated region
      $region37: #{gmvae_forward.1} parent=5 // pred_check
        _
      $region38: #{gmvae_forward.1} parent=5 // pred_check_branch
        %239 = sbr.rel (%p236) target = $region40
      $region39: #{gmvae_forward.1} parent=5 // pred_region
        %s240 = ssub.s32 %s16, 1
        %p241 = scmp.lt.s32.totalorder %s21, 1
        %s242 = scalar_select %p241, %s21, 1
        %s243 = smul.addr %s242, 8
        %s244 = scalar_lea.vmem %s0, %s243
        %p245 = pneg %p42
        %p246 = pneg %p39
        %p247 = scmp.lt.s32.totalorder %s21, 1
        %s248 = scalar_select %p247, %s21, 1
        %s249 = smul.addr %s248, 8
        %s250 = scalar_lea.vmem %s1, %s249
        %p251 = pneg %p68
        %p252 = pneg %p65
        %p253 = scmp.lt.s32.totalorder %s21, 1
        %s254 = scalar_select %p253, %s21, 1
        %s255 = smul.addr %s254, 8
        %s256 = scalar_lea.vmem %s2, %s255
        %p257 = pneg %p94
        %p258 = pneg %p91
        %p259 = pneg %p115
        %p260 = pneg %p112
        %p261 = pneg %p136
        %p262 = pneg %p133
        %p263 = pneg %p162
        %p264 = pneg %p159
        %s265 = sand.u32 %s149, 1
        %s266 = scalar_lea.sflag [#allocation3], %s265
        %s267 = sand.u32 %s149, 1
        %s268 = smul.addr %s267, 8
        %s269 = scalar_lea.vmem [#allocation2], %s268
        %p270 = pneg %p188
        %p271 = pneg %p185
        %p272 = scmp.lt.s32.totalorder %s21, 1
        %s273 = scalar_select %p272, %s21, 1
        %s274 = smul.addr %s273, 8
        %s275 = scalar_lea.vmem %s6, %s274
        %p276 = scmp.lt.s32.totalorder %s21, 1
        %s277 = scalar_select %p276, %s21, 1
        %s278 = smul.addr %s277, 8
        %s279 = scalar_lea.vmem %s0, %s278
        %p280 = scmp.lt.s32.totalorder %s21, 1
        %s281 = scalar_select %p280, %s21, 1
        %s282 = smul.addr %s281, 8
        %s283 = scalar_lea.vmem %s1, %s282
        %p284 = scmp.lt.s32.totalorder %s21, 1
        %s285 = scalar_select %p284, %s21, 1
        %s286 = smul.addr %s285, 8
        %s287 = scalar_lea.vmem %s2, %s286
        %p288 = scmp.lt.s32.totalorder %s21, 1
        %s289 = scalar_select %p288, %s21, 1
        %s290 = smul.addr %s289, 8
        %s291 = scalar_lea.vmem %s6, %s290
        %v292 = vld [vmem:[%s279] sm:$0xff]
        %v293 = vld [vmem:[%s283] sm:$0xff]
        %v294 = vmul.f32 %v293, 0.5
        %v295 = vmul.f32 %v294, 1.442695
        %v296 = vpow.pop %v295
        %v297 = vld [vmem:[%s287] sm:$0xff]
        %v298 = vmul.f32 %v296, %v297
        %v299 = vadd.f32 %v292, %v298
        %vm300 = vcmask 261120
        %301 = vst.msk [vmem:[%s269] sm:$0xff] %vm300, %v299
        %v302 = vmul.f32 %v299, %v299
        %304 = vrot.lane.b32.xlu0 %v299, 32
        %v305 = vpop.permute.xlu0 %304
        %v307 = vsel %vm300, %v302, %v305
        %v308 = vld [vmem:[%s3] sm:$0xff]
        %v309 = vld [vmem:[%s3 + $0x8] sm:$0xff]
        %v310 = vld [vmem:[%s3 + $0x10] sm:$0xff]
        %v311 = vld [vmem:[%s3 + $0x18] sm:$0xff]
        %v312 = vld [vmem:[%s3 + $0x20] sm:$0xff]
        %v313 = vld [vmem:[%s3 + $0x28] sm:$0xff]
        %v314 = vld [vmem:[%s3 + $0x30] sm:$0xff]
        %v315 = vld [vmem:[%s3 + $0x38] sm:$0xff]
        %v316 = vld [vmem:[%s4] sm:$0x1]
        %v318 = vlaneseq
        %v319 = vshrl.u32 %v318, 7
        %v320 = vsub.s32 0, %v319
        %v321 = vrot.slane %v316, %v320
        %vm323 = vcmask 523264
        %v325 = vsel %vm323, %v307, 0
        %327 = vmatprep.subr.mxu0 0.0
        %328 = vmatpush1.msra.mxu0 0.0
        %329 = vmatprep.subr.mxu0 0.0
        %330 = vmatpush1.msra.mxu0 0.0
        %331 = vmatprep.subr.mxu0 0.0
        %332 = vmatpush1.msra.mxu0 0.0
        %333 = vmatprep.subr.mxu0 0.0
        %334 = vmatpush1.msra.mxu0 0.0
        %335 = vmatprep.subr.mxu0 0.0
        %336 = vmatpush1.msra.mxu0 0.0
        %337 = vmatprep.subr.mxu0 0.0
        %338 = vmatpush1.msra.mxu0 0.0
        %339 = vmatprep.subr.mxu0 0.0
        %340 = vmatpush1.msra.mxu0 0.0
        %341 = vmatprep.subr.mxu0 0.0
        %342 = vmatpush1.msra.mxu0 0.0
        %343 = vmatprep.subr.mxu0 0.0
        %344 = vmatpush1.msra.mxu0 %v315
        %345 = vmatprep.subr.mxu0 0.0
        %346 = vmatpush1.msra.mxu0 %v314
        %347 = vmatprep.subr.mxu0 0.0
        %348 = vmatpush1.msra.mxu0 %v313
        %349 = vmatprep.subr.mxu0 0.0
        %350 = vmatpush1.msra.mxu0 %v312
        %351 = vmatprep.subr.mxu0 0.0
        %352 = vmatpush1.msra.mxu0 %v311
        %353 = vmatprep.subr.mxu0 0.0
        %354 = vmatpush1.msra.mxu0 %v310
        %355 = vmatprep.subr.mxu0 0.0
        %356 = vmatpush1.msra.mxu0 %v309
        %357 = vmatprep.subr.mxu0 0.0
        %358 = vmatpush1.msra.mxu0 %v308
        %359 = vmatprep.subr.mxu0 0.0
        %360 = vmatpush2.msra.mxu0 0.0
        %361 = vmatprep.subr.mxu0 0.0
        %362 = vmatpush2.msra.mxu0 0.0
        %363 = vmatprep.subr.mxu0 0.0
        %364 = vmatpush2.msra.mxu0 0.0
        %365 = vmatprep.subr.mxu0 0.0
        %366 = vmatpush2.msra.mxu0 0.0
        %367 = vmatprep.subr.mxu0 0.0
        %368 = vmatpush2.msra.mxu0 0.0
        %369 = vmatprep.subr.mxu0 0.0
        %370 = vmatpush2.msra.mxu0 0.0
        %371 = vmatprep.subr.mxu0 0.0
        %372 = vmatpush2.msra.mxu0 0.0
        %373 = vmatprep.subr.mxu0 0.0
        %374 = vmatpush2.msra.mxu0 0.0
        %375 = vmatprep.subr.mxu0 0.0
        %376 = vmatpush2.msra.mxu0 0.0
        %377 = vmatprep.subr.mxu0 0.0
        %378 = vmatpush2.msra.mxu0 0.0
        %379 = vmatprep.subr.mxu0 0.0
        %380 = vmatpush2.msra.mxu0 0.0
        %381 = vmatprep.subr.mxu0 0.0
        %382 = vmatpush2.msra.mxu0 0.0
        %383 = vmatprep.subr.mxu0 0.0
        %384 = vmatpush2.msra.mxu0 0.0
        %385 = vmatprep.subr.mxu0 0.0
        %386 = vmatpush2.msra.mxu0 0.0
        %387 = vmatprep.subr.mxu0 0.0
        %388 = vmatpush2.msra.mxu0 0.0
        %389 = vmatprep.subr.mxu0 0.0
        %390 = vmatpush2.msra.mxu0 0.0
        %391 = vmatprep.mubr.f32.mxu0 0.0
        %392 = vmatmul.mubr.f32.gmra.mxu0 %v325
        %v393 = vpop.f32.mrf.mxu0
        %v394 = vadd.f32 %v321, %v393
        %v395 = vpop.f32.mrf.mxu0
        %396 = vdwg.mxu0
        %397 = vst [vmem:[%s291] sm:$0xff] %v394
        %s398 = sand.u32 %s149, 1
        %s399 = scalar_lea.sflag [#allocation3], %s398
        %s400 = sand.u32 %s149, 1
        %s401 = smul.addr %s400, 8
        %s402 = scalar_lea.vmem [#allocation2], %s401
        %p403 = scmp.lt.s32.totalorder %s21, 1
        %s404 = scalar_select %p403, %s21, 1
        %s405 = smul.addr %s404, 8
        %s406 = scalar_lea.vmem %s6, %s405
        // Predicated region
        $region41: #{gmvae_forward.1} parent=39 // pred_check
          %p407 = pneg %p159
        $region42: #{gmvae_forward.1} parent=39 // pred_check_branch
          %409 = sbr.rel (%p407) target = $region44
        $region43: #{gmvae_forward.1} parent=39 // pred_region
          %s411 = ssub.s32 128, 128
          %412 = vsyncadd %s399, %s411
          %s413 = smul.addr %s21, 128
          %s414 = scalar_lea.hbm %s5, %s413
          %s416 = sshll.u32 %s402, 4
          %s417 = int_to_ptr.vmem [resolvable:$true] %s416
          %419 = dma.vmem_to_hbm [thread:$0]  %s417, 128, %s414, %s399
        $region44: #{gmvae_forward.1} parent=39 // pred_fallthru
          _
        // Predicated region
        $region45: #{gmvae_forward.1} parent=39 // pred_check
          %p420 = pneg %p185
        $region46: #{gmvae_forward.1} parent=39 // pred_check_branch
          %422 = sbr.rel (%p420) target = $region48
        $region47: #{gmvae_forward.1} parent=39 // pred_region
          _
        $region48: #{gmvae_forward.1} parent=39 // pred_fallthru
          _
      $region40: #{gmvae_forward.1} parent=5 // pred_fallthru
        _
      %p423 = scmp.le.s32.totalorder 2, %s16
      // Predicated region
      $region49: #{gmvae_forward.1} parent=5 // pred_check
        %p424 = pneg %p423
      $region50: #{gmvae_forward.1} parent=5 // pred_check_branch
        %426 = sbr.rel (%p424) target = $region52
      $region51: #{gmvae_forward.1} parent=5 // pred_region
        %s427 = ssub.s32 %s16, 2
        // Predicated region
        $region53: #{gmvae_forward.1} parent=51 // pred_check
          %p428 = pneg %p165
        $region54: #{gmvae_forward.1} parent=51 // pred_check_branch
          %430 = sbr.rel (%p428) target = $region56
        $region55: #{gmvae_forward.1} parent=51 // pred_region
          %s431 = sand.u32 %s150, 1
          %s432 = scalar_lea.sflag [#allocation3], %s431
          %s433 = sand.u32 %s150, 1
          %s434 = smul.addr %s433, 8
          %s435 = scalar_lea.vmem [#allocation2], %s434
          %436 = dma.done %s432, 128
        $region56: #{gmvae_forward.1} parent=51 // pred_fallthru
          _
        // Predicated region
        $region57: #{gmvae_forward.1} parent=51 // pred_check
          %p437 = pneg %p191
        $region58: #{gmvae_forward.1} parent=51 // pred_check_branch
          %439 = sbr.rel (%p437) target = $region60
        $region59: #{gmvae_forward.1} parent=51 // pred_region
          %p440 = scmp.lt.s32.totalorder %s22, 1
          %s441 = scalar_select %p440, %s22, 1
          %s442 = smul.addr %s441, 8
          %s443 = scalar_lea.vmem %s6, %s442
        $region60: #{gmvae_forward.1} parent=51 // pred_fallthru
          _
      $region52: #{gmvae_forward.1} parent=5 // pred_fallthru
        _
    $region6: #{gmvae_forward.1} parent=1 // loop_footer
      %s20 = sadd.s32 1, %s16
    $region7: #{gmvae_forward.1} parent=1 // loop_footer_branch
      %15 = sbr.rel target = $region3
    $region8: #{gmvae_forward.1} parent=1 // loop_exit
      _
    %444 = vsyncpa [#allocation3], 1
    %s445 = scalar_lea.sflag [#allocation3], 1
    %446 = vsyncpa %s445, 1

</llo_original>
